<compile_context>
chip_gen: v7x
topology: tpu7x:2x2x1
jax: 0.10.0
libtpu: 0.0.40
codegen_flags: <defaults>
</compile_context>

<pallas_src>
import functools

import jax
import jax.numpy as jnp
from jax import lax
from jax.experimental import pallas as pl
from jax.experimental.pallas import tpu as pltpu


def _biaffine_kernel(x_ref, y_ref, w_ref, o_ref, *,
                     n_x, n_y, bias_x, bias_y, inv_scale):
    x = x_ref[...]            # (t_sx, n_x)
    y = y_ref[...]            # (Sy, n_y)
    w = w_ref[...]            # (n_x + bias_x, n_y + bias_y)

    w_xy = w[:n_x, :n_y] if (bias_x or bias_y) else w

    # (t_sx, n_x) @ (n_x, n_y) -> (t_sx, n_y)
    xw = jnp.dot(x, w_xy, preferred_element_type=jnp.float32)
    # Contract feature axis against y without transposing y:
    # (t_sx, n_y) . (Sy, n_y) -> (t_sx, Sy)
    s = lax.dot_general(xw, y, (((1,), (1,)), ((), ())),
                        preferred_element_type=jnp.float32)

    if bias_y:
        # ones column of yb:  x @ W[:n_x, n_y] -> (t_sx, 1), broadcast over q
        s = s + jnp.dot(x, w[:n_x, n_y:n_y + 1],
                        preferred_element_type=jnp.float32)
    if bias_x:
        # ones column of xb:  W[n_x, :n_y] . y -> (1, Sy), broadcast over p
        s = s + lax.dot_general(w[n_x:n_x + 1, :n_y], y,
                                (((1,), (1,)), ((), ())),
                                preferred_element_type=jnp.float32)
    if bias_x and bias_y:
        s = s + w[n_x:n_x + 1, n_y:n_y + 1]   # scalar corner term, broadcasts

    if inv_scale != 1.0:                      # static (trace-time) branch
        s = s * inv_scale

    o_ref[...] = s.astype(o_ref.dtype)


def biaffine(x, y, weight, *, bias_x=False, bias_y=False, scale=0):
    """Pallas equivalent of Biaffine.forward.

    x:      [B, Sx, n_x] float32
    y:      [B, Sy, n_y] float32
    weight: [n_out, n_x + bias_x, n_y + bias_y] float32 (PyTorch layout)
    Returns [B, n_out, Sx, Sy]; the n_out axis is squeezed when n_out == 1,
    and scores are divided by n_x ** scale (matching the torch module).
    """
    B, Sx, n_x = x.shape
    By, Sy, n_y = y.shape
    assert B == By, "batch dims of x and y must match"
    n_out, wi, wj = weight.shape
    assert wi == n_x + int(bias_x) and wj == n_y + int(bias_y), "weight shape mismatch"

    inv_scale = 1.0 / (float(n_x) ** scale)

    t_sx = min(Sx, 256)                      # seq-x tile; full array when small
    grid = (B, n_out, pl.cdiv(Sx, t_sx))

    kernel = functools.partial(
        _biaffine_kernel, n_x=n_x, n_y=n_y,
        bias_x=bool(bias_x), bias_y=bool(bias_y), inv_scale=inv_scale)

    flops_per = 2 * Sx * n_x * n_y + 2 * Sx * Sy * n_y
    if bias_y:
        flops_per += 2 * Sx * n_x
    if bias_x:
        flops_per += 2 * Sy * n_y
    cost = pl.CostEstimate(
        flops=B * n_out * flops_per,
        transcendentals=0,
        bytes_accessed=4 * (x.size + y.size + weight.size + B * n_out * Sx * Sy),
    )

    out = pl.pallas_call(
        kernel,
        out_shape=jax.ShapeDtypeStruct((B, n_out, Sx, Sy), x.dtype),
        grid_spec=pltpu.PrefetchScalarGridSpec(
            num_scalar_prefetch=0,
            grid=grid,
            in_specs=[
                pl.BlockSpec((None, t_sx, n_x), lambda b, o, sx: (b, sx, 0)),
                pl.BlockSpec((None, Sy, n_y), lambda b, o, sx: (b, 0, 0)),
                pl.BlockSpec((None, wi, wj), lambda b, o, sx: (o, 0, 0)),
            ],
            out_specs=pl.BlockSpec((None, None, t_sx, Sy),
                                   lambda b, o, sx: (b, o, sx, 0)),
        ),
        compiler_params=pltpu.CompilerParams(
            dimension_semantics=("parallel", "parallel", "arbitrary")),
        cost_estimate=cost,
    )(x, y, weight)

    if n_out == 1:
        out = jnp.squeeze(out, axis=1)       # match torch's s.squeeze(1)
    return out


if __name__ == "__main__":
    key = jax.random.PRNGKey(0)
    kx, ky, kw1, kw2 = jax.random.split(key, 4)

    B, S, n_x, n_y = 2, 8, 32, 32
    x = jax.random.normal(kx, (B, S, n_x), dtype=jnp.float32)
    y = jax.random.normal(ky, (B, S, n_y), dtype=jnp.float32)

    # --- Config 1: module defaults (n_out=1, bias_x=bias_y=False, scale=0). ---
    # Default init is zeros_ (trivially-zero scores), so use random weights to
    # make the correctness check meaningful.
    w1 = 0.1 * jax.random.normal(kw1, (1, n_x, n_y), dtype=jnp.float32)
    out1 = jax.block_until_ready(biaffine(x, y, w1))
    ref1 = jnp.einsum('bxi,oij,byj->boxy', x, w1, y,
                      precision=lax.Precision.HIGHEST)[:, 0]
    assert out1.shape == (B, S, S)
    assert jnp.allclose(out1, ref1, atol=5e-2, rtol=1e-2), \
        float(jnp.max(jnp.abs(out1 - ref1)))

    # --- Config 2: n_out=3, bias_x=bias_y=True, scale=1. ---
    n_out = 3
    w2 = 0.1 * jax.random.normal(kw2, (n_out, n_x + 1, n_y + 1), dtype=jnp.float32)
    out2 = jax.block_until_ready(
        biaffine(x, y, w2, bias_x=True, bias_y=True, scale=1))
    xb = jnp.concatenate([x, jnp.ones_like(x[..., :1])], -1)
    yb = jnp.concatenate([y, jnp.ones_like(y[..., :1])], -1)
    ref2 = jnp.einsum('bxi,oij,byj->boxy', xb, w2, yb,
                      precision=lax.Precision.HIGHEST) / (n_x ** 1)
    assert out2.shape == (B, n_out, S, S)
    assert jnp.allclose(out2, ref2, atol=5e-2, rtol=1e-2), \
        float(jnp.max(jnp.abs(out2 - ref2)))

    print("KERNEL_OK")
</pallas_src>

<mosaic_0001>
module attributes {stable_mosaic.version = 11 : i64} {
  func.func @_biaffine_kernel(%arg0: i32, %arg1: i32, %arg2: i32, %arg3: memref<1x8x32xf32, #tpu.memory_space<vmem>>, %arg4: memref<1x8x32xf32, #tpu.memory_space<vmem>>, %arg5: memref<1x32x32xf32, #tpu.memory_space<vmem>>, %arg6: memref<1x1x8x8xf32, #tpu.memory_space<vmem>>) attributes {dimension_semantics = [#tpu.dimension_semantics<parallel>, #tpu.dimension_semantics<parallel>, #tpu.dimension_semantics<arbitrary>], iteration_bounds = array<i64: 2, 1, 1>, scalar_prefetch = 0 : i64, scratch_operands = 0 : i64, tpu.core_type = #tpu.core_type<tc>, window_params = [{transform_indices = @transform_0, window_bounds = array<i64: 1, 8, 32>}, {transform_indices = @transform_1, window_bounds = array<i64: 1, 8, 32>}, {transform_indices = @transform_2, window_bounds = array<i64: 1, 32, 32>}, {transform_indices = @transform_3, window_bounds = array<i64: 1, 1, 8, 8>}]} {
    %c0 = arith.constant 0 : index
    %c0_0 = arith.constant 0 : index
    %c0_1 = arith.constant 0 : index
    %0 = vector.load %arg3[%c0, %c0_0, %c0_1] : memref<1x8x32xf32, #tpu.memory_space<vmem>>, vector<1x8x32xf32>
    %1 = vector.shape_cast %0 : vector<1x8x32xf32> to vector<8x32xf32>
    %c0_2 = arith.constant 0 : index
    %c0_3 = arith.constant 0 : index
    %c0_4 = arith.constant 0 : index
    %2 = vector.load %arg4[%c0_2, %c0_3, %c0_4] : memref<1x8x32xf32, #tpu.memory_space<vmem>>, vector<1x8x32xf32>
    %3 = vector.shape_cast %2 : vector<1x8x32xf32> to vector<8x32xf32>
    %c0_5 = arith.constant 0 : index
    %c0_6 = arith.constant 0 : index
    %c0_7 = arith.constant 0 : index
    %4 = vector.load %arg5[%c0_5, %c0_6, %c0_7] : memref<1x32x32xf32, #tpu.memory_space<vmem>>, vector<1x32x32xf32>
    %5 = vector.shape_cast %4 : vector<1x32x32xf32> to vector<32x32xf32>
    %cst = arith.constant dense<0.000000e+00> : vector<8x32xf32>
    %6 = tpu.matmul %1, %5, %cst {dimension_numbers = #tpu.dot_dimension_numbers<[1], [0], [0], [1], [0, 0, 1, 1], [], []>} : vector<8x32xf32>, vector<32x32xf32>, vector<8x32xf32> -> vector<8x32xf32>
    %cst_8 = arith.constant dense<0.000000e+00> : vector<8x8xf32>
    %7 = tpu.matmul %6, %3, %cst_8 {dimension_numbers = #tpu.dot_dimension_numbers<[1], [1], [0], [0], [0, 0, 1, 0], [], []>} : vector<8x32xf32>, vector<8x32xf32>, vector<8x8xf32> -> vector<8x8xf32>
    %c0_9 = arith.constant 0 : index
    %c0_10 = arith.constant 0 : index
    %c0_11 = arith.constant 0 : index
    %c0_12 = arith.constant 0 : index
    %8 = vector.load %arg6[%c0_9, %c0_10, %c0_11, %c0_12] : memref<1x1x8x8xf32, #tpu.memory_space<vmem>>, vector<1x1x8x8xf32>
    %9 = vector.shape_cast %8 : vector<1x1x8x8xf32> to vector<8x8xf32>
    %10 = vector.shape_cast %7 : vector<8x8xf32> to vector<1x1x8x8xf32>
    tpu.vector_store %arg6[%c0_9, %c0_10, %c0_11, %c0_12], %10 {strides = array<i32>} : memref<1x1x8x8xf32, #tpu.memory_space<vmem>>, vector<1x1x8x8xf32>,
    return
  }
  func.func @transform_0(%arg0: i32, %arg1: i32, %arg2: i32) -> (i32, i32, i32) {
    %c0_i32 = arith.constant 0 : i32
    %c0_i32_0 = arith.constant 0 : i32
    return %arg0, %arg2, %c0_i32 : i32, i32, i32
  }
  func.func @transform_1(%arg0: i32, %arg1: i32, %arg2: i32) -> (i32, i32, i32) {
    %c0_i32 = arith.constant 0 : i32
    %c0_i32_0 = arith.constant 0 : i32
    %c0_i32_1 = arith.constant 0 : i32
    return %arg0, %c0_i32, %c0_i32_0 : i32, i32, i32
  }
  func.func @transform_2(%arg0: i32, %arg1: i32, %arg2: i32) -> (i32, i32, i32) {
    %c0_i32 = arith.constant 0 : i32
    %c0_i32_0 = arith.constant 0 : i32
    %c0_i32_1 = arith.constant 0 : i32
    return %arg1, %c0_i32, %c0_i32_0 : i32, i32, i32
  }
  func.func @transform_3(%arg0: i32, %arg1: i32, %arg2: i32) -> (i32, i32, i32, i32) {
    %c0_i32 = arith.constant 0 : i32
    %c0_i32_0 = arith.constant 0 : i32
    return %arg0, %arg1, %arg2, %c0_i32 : i32, i32, i32, i32
  }
}

</mosaic_0001>

<llo_original>
// kernel: tpu_custom_call.1
$region0: #{tpu_custom_call.1}
  #allocation0 [shape = 'u32[]', space=smem, size = 0x4, offset = 0x4, fixed_abs, tag = 'smem constant byte address 0x4 - core index']
  #allocation1 [shape = 'u32[144,128]{1,0:T(1,128)}', space=vmem, size = 0x12000, scoped, tag = 'internal scratch']
  %s0 = inlined_call_operand.hbm [shape: f32[2,8,32], index: 0, kind: input, shape index: {}]
  %s1 = inlined_call_operand.hbm [shape: f32[2,8,32], index: 1, kind: input, shape index: {}]
  %s2 = inlined_call_operand.hbm [shape: f32[1,32,32], index: 2, kind: input, shape index: {}]
  %s3 = inlined_call_operand.hbm [shape: f32[2,1,8,8], index: 3, kind: output, shape index: {}]
  %s4 = sld [smem:[#allocation0]]
  $region57: #{tpu_custom_call.1} parent=0
    _
  %s6 = ssub.s32 1, %s4
  %s7 = scalar_select 0, %s6, %s4
  $region1: #{tpu_custom_call.1} parent=0
    #allocation2 [shape = 'u8[8192]{0}', space=vmem, size = 0x2000, scoped, tag = 'input window, operand 0']
    #allocation3 [shape = 's32[2]{0}', space=sflag, size = 0x8, scoped, tag = 'scoped memory for tpu_custom_call.1']
    #allocation4 [shape = 's32[2]{0}', space=sflag, size = 0x8, scoped, tag = 'scoped memory for tpu_custom_call.1']
    #allocation5 [shape = 'u8[8192]{0}', space=vmem, size = 0x2000, scoped, tag = 'input window, operand 1']
    #allocation6 [shape = 's32[2]{0}', space=sflag, size = 0x8, scoped, tag = 'scoped memory for tpu_custom_call.1']
    #allocation7 [shape = 'u8[16384]{0}', space=vmem, size = 0x4000, scoped, tag = 'input window, operand 2, single buffered']
    #allocation8 [shape = 'u8[8192]{0}', space=vmem, size = 0x2000, scoped, tag = 'output window, operand 0']
    %8 = vsyncpa [#allocation3], 0
    %s9 = scalar_lea.sflag [#allocation3], 1
    %10 = vsyncpa %s9, 0
    %11 = vsyncpa [#allocation6], 0
    %s12 = scalar_lea.sflag [#allocation6], 1
    %13 = vsyncpa %s12, 0
    %14 = vsyncpa [#allocation4], 0
    %s15 = scalar_lea.sflag [#allocation4], 1
    %16 = vsyncpa %s15, 0
    loop: start=0, step=1, limit=4
    $region2: #{tpu_custom_call.1} parent=1 // loop_pre_header
      _
    $region3: #{tpu_custom_call.1} parent=1 // loop_header
      %s18 = sphi 0, %s22
      %p19 = scmp.ge.s32.totalorder %s18, 4
      %s25 = sphi 0, %s44
      %s26 = sphi 0, %s40
      %s27 = sphi 0, %s36
      %s28 = sphi 0, %s25
      %s29 = sphi 0, %s26
      %s30 = sphi 0, %s27
      %s31 = sphi 0, %s28
      %s32 = sphi 0, %s29
      %s33 = sphi 0, %s30
      %s49 = sphi 0, %s51
      %s52 = sphi 0, %s49
      %s53 = sphi 0, %s52
      %s69 = sphi 0, %s53
      %s75 = sphi 0, %s77
      %s78 = sphi 0, %s75
      %s79 = sphi 0, %s78
      %s95 = sphi 0, %s79
      %s101 = sphi 0, %s103
      %s104 = sphi 0, %s101
      %s105 = sphi 0, %s104
      %s121 = sphi 0, %s105
      %s131 = sphi 0, %s133
      %s134 = sphi 0, %s131
      %s135 = sphi 0, %s134
      %s151 = sphi 0, %s135
    $region4: #{tpu_custom_call.1} parent=1 // loop_header_branch
      %21 = sbr.rel (%p19) target = $region8
    $region5: #{tpu_custom_call.1} parent=1 // loop_body
      %s23 = ssub.s32 %s18, 1
      %s24 = ssub.s32 %s18, 2
      %s34 = sadd.s32 1, %s27
      %p35 = scmp.ge.s32.totalorder %s34, 1
      %s36 = scalar_select %p35, 0, %s34
      %s37 = sadd.s32 1, %s26
      %s38 = scalar_select %p35, %s37, %s26
      %p39 = scmp.ge.s32.totalorder %s38, 1
      %s40 = scalar_select %p39, 0, %s38
      %s41 = sadd.s32 1, %s25
      %s42 = scalar_select %p39, %s41, %s25
      %p43 = scmp.ge.s32.totalorder %s42, 2
      %s44 = scalar_select %p43, 0, %s42
      %s45 = ssub.s32 %s25, %s44
      %s46 = ssub.s32 %s27, %s36
      %s47 = sor.u32 %s45, %s46
      %p48 = scmp.eq.s32.totalorder %s47, 0
      %s50 = sadd.s32 %s49, 1
      %s51 = scalar_select %p48, %s49, %s50
      %p54 = pneg %p48
      %p55 = scmp.eq.s32.totalorder %s18, 1
      %p56 = por %p54, %p55
      %p57 = scmp.ne.s32.totalorder %s49, %s52
      %p58 = scmp.eq.s32.totalorder %s18, 0
      %p59 = por %p57, %p58
      %p60 = scmp.ne.s32.totalorder %s49, %s52
      %p61 = scmp.eq.s32.totalorder %s23, 1
      %p62 = por %p60, %p61
      %p63 = scmp.ne.s32.totalorder %s52, %s53
      %p64 = scmp.eq.s32.totalorder %s23, 0
      %p65 = por %p63, %p64
      %p66 = scmp.ne.s32.totalorder %s52, %s53
      %p67 = scmp.eq.s32.totalorder %s24, 1
      %p68 = por %p66, %p67
      %p70 = scmp.ne.s32.totalorder %s53, %s69
      %p71 = scmp.eq.s32.totalorder %s24, 0
      %p72 = por %p70, %p71
      %s73 = ssub.s32 %s25, %s44
      %p74 = scmp.eq.s32.totalorder %s73, 0
      %s76 = sadd.s32 %s75, 1
      %s77 = scalar_select %p74, %s75, %s76
      %p80 = pneg %p74
      %p81 = scmp.eq.s32.totalorder %s18, 1
      %p82 = por %p80, %p81
      %p83 = scmp.ne.s32.totalorder %s75, %s78
      %p84 = scmp.eq.s32.totalorder %s18, 0
      %p85 = por %p83, %p84
      %p86 = scmp.ne.s32.totalorder %s75, %s78
      %p87 = scmp.eq.s32.totalorder %s23, 1
      %p88 = por %p86, %p87
      %p89 = scmp.ne.s32.totalorder %s78, %s79
      %p90 = scmp.eq.s32.totalorder %s23, 0
      %p91 = por %p89, %p90
      %p92 = scmp.ne.s32.totalorder %s78, %s79
      %p93 = scmp.eq.s32.totalorder %s24, 1
      %p94 = por %p92, %p93
      %p96 = scmp.ne.s32.totalorder %s79, %s95
      %p97 = scmp.eq.s32.totalorder %s24, 0
      %p98 = por %p96, %p97
      %s99 = ssub.s32 %s26, %s40
      %p100 = scmp.eq.s32.totalorder %s99, 0
      %s102 = sadd.s32 %s101, 1
      %s103 = scalar_select %p100, %s101, %s102
      %p106 = pneg %p100
      %p107 = scmp.eq.s32.totalorder %s18, 1
      %p108 = por %p106, %p107
      %p109 = scmp.ne.s32.totalorder %s101, %s104
      %p110 = scmp.eq.s32.totalorder %s18, 0
      %p111 = por %p109, %p110
      %p112 = scmp.ne.s32.totalorder %s101, %s104
      %p113 = scmp.eq.s32.totalorder %s23, 1
      %p114 = por %p112, %p113
      %p115 = scmp.ne.s32.totalorder %s104, %s105
      %p116 = scmp.eq.s32.totalorder %s23, 0
      %p117 = por %p115, %p116
      %p118 = scmp.ne.s32.totalorder %s104, %s105
      %p119 = scmp.eq.s32.totalorder %s24, 1
      %p120 = por %p118, %p119
      %p122 = scmp.ne.s32.totalorder %s105, %s121
      %p123 = scmp.eq.s32.totalorder %s24, 0
      %p124 = por %p122, %p123
      %s125 = ssub.s32 %s25, %s44
      %s126 = ssub.s32 %s26, %s40
      %s127 = sor.u32 %s125, %s126
      %s128 = ssub.s32 %s27, %s36
      %s129 = sor.u32 %s127, %s128
      %p130 = scmp.eq.s32.totalorder %s129, 0
      %s132 = sadd.s32 %s131, 1
      %s133 = scalar_select %p130, %s131, %s132
      %p136 = pneg %p130
      %p137 = scmp.eq.s32.totalorder %s18, 1
      %p138 = por %p136, %p137
      %p139 = scmp.ne.s32.totalorder %s131, %s134
      %p140 = scmp.eq.s32.totalorder %s18, 0
      %p141 = por %p139, %p140
      %p142 = scmp.ne.s32.totalorder %s131, %s134
      %p143 = scmp.eq.s32.totalorder %s23, 1
      %p144 = por %p142, %p143
      %p145 = scmp.ne.s32.totalorder %s134, %s135
      %p146 = scmp.eq.s32.totalorder %s23, 0
      %p147 = por %p145, %p146
      %p148 = scmp.ne.s32.totalorder %s134, %s135
      %p149 = scmp.eq.s32.totalorder %s24, 1
      %p150 = por %p148, %p149
      %p152 = scmp.ne.s32.totalorder %s135, %s151
      %p153 = scmp.eq.s32.totalorder %s24, 0
      %p154 = por %p152, %p153
      %p155 = scmp.le.s32.totalorder 1, %s18
      %p156 = scmp.lt.s32.totalorder %s18, 3
      %p157 = pnand %p155, %p156
      %p158 = pneg %p157
      // Predicated region
      $region9: #{tpu_custom_call.1} parent=5 // pred_check
        _
      $region10: #{tpu_custom_call.1} parent=5 // pred_check_branch
        %160 = sbr.rel (%p157) target = $region12
      $region11: #{tpu_custom_call.1} parent=5 // pred_region
        %s161 = ssub.s32 %s18, 1
        // Predicated region
        $region13: #{tpu_custom_call.1} parent=11 // pred_check
          %p162 = pneg %p117
        $region14: #{tpu_custom_call.1} parent=11 // pred_check_branch
          %164 = sbr.rel (%p162) target = $region16
        $region15: #{tpu_custom_call.1} parent=11 // pred_region
          %s166 = ssub.s32 512, 512
          %167 = vsyncadd [#allocation6], %s166
          %s168 = smul.addr %s29, 4
          %s169 = smul.addr %s168, 128
          %s170 = scalar_lea.hbm %s2, %s169
          %s171 = sshll.u32 [#allocation7], 4
          %s172 = int_to_ptr.vmem [resolvable:$true] %s171
          %177 = dma.hbm_to_vmem [thread:$0]  %s170, 512, %s172, [#allocation6], 128, 128, 8
        $region16: #{tpu_custom_call.1} parent=11 // pred_fallthru
          _
      $region12: #{tpu_custom_call.1} parent=5 // pred_fallthru
        _
      %p178 = scmp.lt.s32.totalorder %s18, 2
      // Predicated region
      $region17: #{tpu_custom_call.1} parent=5 // pred_check
        %p179 = pneg %p178
      $region18: #{tpu_custom_call.1} parent=5 // pred_check_branch
        %181 = sbr.rel (%p179) target = $region20
      $region19: #{tpu_custom_call.1} parent=5 // pred_region
        // Predicated region
        $region21: #{tpu_custom_call.1} parent=19 // pred_check
          %p182 = pneg %p59
        $region22: #{tpu_custom_call.1} parent=19 // pred_check_branch
          %184 = sbr.rel (%p182) target = $region24
        $region23: #{tpu_custom_call.1} parent=19 // pred_region
          %s185 = sand.u32 %s49, 1
          %s186 = scalar_lea.sflag [#allocation3], %s185
          %s187 = sand.u32 %s49, 1
          %s188 = smul.addr %s187, 8
          %s189 = scalar_lea.vmem [#allocation2], %s188
          %s191 = ssub.s32 128, 128
          %192 = vsyncadd %s186, %s191
          %s193 = sadd.s32 %s27, %s25
          %s194 = smul.addr %s193, 128
          %s195 = scalar_lea.hbm %s0, %s194
          %s197 = sshll.u32 %s189, 4
          %s198 = int_to_ptr.vmem [resolvable:$true] %s197
          %200 = dma.hbm_to_vmem [thread:$0]  %s195, 128, %s198, %s186
        $region24: #{tpu_custom_call.1} parent=19 // pred_fallthru
          _
        // Predicated region
        $region25: #{tpu_custom_call.1} parent=19 // pred_check
          %p201 = pneg %p85
        $region26: #{tpu_custom_call.1} parent=19 // pred_check_branch
          %203 = sbr.rel (%p201) target = $region28
        $region27: #{tpu_custom_call.1} parent=19 // pred_region
          %s204 = sand.u32 %s18, 1
          %s205 = scalar_lea.sflag [#allocation6], %s204
          %s206 = sand.u32 %s75, 1
          %s207 = smul.addr %s206, 8
          %s208 = scalar_lea.vmem [#allocation5], %s207
          %s210 = ssub.s32 128, 128
          %211 = vsyncadd %s205, %s210
          %s212 = smul.addr %s25, 128
          %s213 = scalar_lea.hbm %s1, %s212
          %s215 = sshll.u32 %s208, 4
          %s216 = int_to_ptr.vmem [resolvable:$true] %s215
          %218 = dma.hbm_to_vmem [thread:$0]  %s213, 128, %s216, %s205
        $region28: #{tpu_custom_call.1} parent=19 // pred_fallthru
          _
      $region20: #{tpu_custom_call.1} parent=5 // pred_fallthru
        _
      %p219 = scmp.le.s32.totalorder 1, %s18
      %p220 = scmp.lt.s32.totalorder %s18, 3
      %p221 = pnand %p219, %p220
      %p222 = pneg %p221
      // Predicated region
      $region29: #{tpu_custom_call.1} parent=5 // pred_check
        _
      $region30: #{tpu_custom_call.1} parent=5 // pred_check_branch
        %224 = sbr.rel (%p221) target = $region32
      $region31: #{tpu_custom_call.1} parent=5 // pred_region
        %s225 = ssub.s32 %s18, 1
        %s226 = sand.u32 %s52, 1
        %s227 = scalar_lea.sflag [#allocation3], %s226
        %s228 = sand.u32 %s52, 1
        %s229 = smul.addr %s228, 8
        %s230 = scalar_lea.vmem [#allocation2], %s229
        // Predicated region
        $region33: #{tpu_custom_call.1} parent=31 // pred_check
          %p231 = pneg %p65
        $region34: #{tpu_custom_call.1} parent=31 // pred_check_branch
          %233 = sbr.rel (%p231) target = $region36
        $region35: #{tpu_custom_call.1} parent=31 // pred_region
          %234 = dma.done %s227, 128
        $region36: #{tpu_custom_call.1} parent=31 // pred_fallthru
          _
        %s235 = sand.u32 %s23, 1
        %s236 = scalar_lea.sflag [#allocation6], %s235
        %s237 = sand.u32 %s78, 1
        %s238 = smul.addr %s237, 8
        %s239 = scalar_lea.vmem [#allocation5], %s238
        // Predicated region
        $region37: #{tpu_custom_call.1} parent=31 // pred_check
          %p240 = pneg %p91
        $region38: #{tpu_custom_call.1} parent=31 // pred_check_branch
          %242 = sbr.rel (%p240) target = $region40
        $region39: #{tpu_custom_call.1} parent=31 // pred_region
          %243 = dma.done %s236, 128
        $region40: #{tpu_custom_call.1} parent=31 // pred_fallthru
          _
        // Predicated region
        $region41: #{tpu_custom_call.1} parent=31 // pred_check
          %p244 = pneg %p117
        $region42: #{tpu_custom_call.1} parent=31 // pred_check_branch
          %246 = sbr.rel (%p244) target = $region44
        $region43: #{tpu_custom_call.1} parent=31 // pred_region
          %247 = dma.done [#allocation6], 512
        $region44: #{tpu_custom_call.1} parent=31 // pred_fallthru
          _
        %s248 = sand.u32 %s52, 1
        %s249 = scalar_lea.sflag [#allocation3], %s248
        %s250 = sand.u32 %s52, 1
        %s251 = smul.addr %s250, 8
        %s252 = scalar_lea.vmem [#allocation2], %s251
        %p253 = pneg %p65
        %p254 = pneg %p62
        %s255 = sand.u32 %s23, 1
        %s256 = scalar_lea.sflag [#allocation6], %s255
        %s257 = sand.u32 %s78, 1
        %s258 = smul.addr %s257, 8
        %s259 = scalar_lea.vmem [#allocation5], %s258
        %p260 = pneg %p91
        %p261 = pneg %p88
        %p262 = pneg %p117
        %p263 = pneg %p114
        %p264 = pneg %p147
        %p265 = pneg %p144
        %s266 = sand.u32 %s134, 1
        %s267 = scalar_lea.sflag [#allocation4], %s266
        %s268 = sand.u32 %s134, 1
        %s269 = smul.addr %s268, 8
        %s270 = scalar_lea.vmem [#allocation8], %s269
        %v271 = vld [vmem:[%s230] sm:$0xff]
        %v272 = vld [vmem:[%s239] sm:$0xff]
        %v273 = vld [vmem:[#allocation7] sm:$0xff]
        %v274 = vld [vmem:[#allocation7 + $0x8] sm:$0xff]
        %v275 = vld [vmem:[#allocation7 + $0x10] sm:$0xff]
        %v276 = vld [vmem:[#allocation7 + $0x18] sm:$0xff]
        %vm277 = vcmask 261120
        %v279 = vsel %vm277, %v271, 0
        %281 = vmatprep.subr.mxu0 0.0
        %282 = vmatpush1.msra.mxu0 %v273
        %283 = vmatprep.subr.mxu0 0.0
        %284 = vmatpush1.msra.mxu0 %v274
        %285 = vmatprep.subr.mxu0 0.0
        %286 = vmatpush1.msra.mxu0 %v275
        %287 = vmatprep.subr.mxu0 0.0
        %288 = vmatpush1.msra.mxu0 %v276
        %289 = vmatprep.subr.mxu0 0.0
        %290 = vmatpush1.msra.mxu0 0.0
        %291 = vmatprep.subr.mxu0 0.0
        %292 = vmatpush1.msra.mxu0 0.0
        %293 = vmatprep.subr.mxu0 0.0
        %294 = vmatpush1.msra.mxu0 0.0
        %295 = vmatprep.subr.mxu0 0.0
        %296 = vmatpush1.msra.mxu0 0.0
        %297 = vmatprep.subr.mxu0 0.0
        %298 = vmatpush1.msra.mxu0 0.0
        %299 = vmatprep.subr.mxu0 0.0
        %300 = vmatpush1.msra.mxu0 0.0
        %301 = vmatprep.subr.mxu0 0.0
        %302 = vmatpush1.msra.mxu0 0.0
        %303 = vmatprep.subr.mxu0 0.0
        %304 = vmatpush1.msra.mxu0 0.0
        %305 = vmatprep.subr.mxu0 0.0
        %306 = vmatpush1.msra.mxu0 0.0
        %307 = vmatprep.subr.mxu0 0.0
        %308 = vmatpush1.msra.mxu0 0.0
        %309 = vmatprep.subr.mxu0 0.0
        %310 = vmatpush1.msra.mxu0 0.0
        %311 = vmatprep.subr.mxu0 0.0
        %312 = vmatpush1.msra.mxu0 0.0
        %313 = vmatprep.subr.mxu0 0.0
        %314 = vmatpush1.msra.mxu0 0.0
        %315 = vmatprep.subr.mxu0 0.0
        %316 = vmatpush1.msra.mxu0 0.0
        %317 = vmatprep.subr.mxu0 0.0
        %318 = vmatpush1.msra.mxu0 0.0
        %319 = vmatprep.subr.mxu0 0.0
        %320 = vmatpush1.msra.mxu0 0.0
        %321 = vmatprep.subr.mxu0 0.0
        %322 = vmatpush1.msra.mxu0 0.0
        %323 = vmatprep.subr.mxu0 0.0
        %324 = vmatpush1.msra.mxu0 0.0
        %325 = vmatprep.subr.mxu0 0.0
        %326 = vmatpush1.msra.mxu0 0.0
        %327 = vmatprep.subr.mxu0 0.0
        %328 = vmatpush1.msra.mxu0 0.0
        %329 = vmatprep.subr.mxu0 0.0
        %330 = vmatpush1.msra.mxu0 0.0
        %331 = vmatprep.subr.mxu0 0.0
        %332 = vmatpush1.msra.mxu0 0.0
        %333 = vmatprep.subr.mxu0 0.0
        %334 = vmatpush1.msra.mxu0 0.0
        %335 = vmatprep.subr.mxu0 0.0
        %336 = vmatpush1.msra.mxu0 0.0
        %337 = vmatprep.subr.mxu0 0.0
        %338 = vmatpush1.msra.mxu0 0.0
        %339 = vmatprep.subr.mxu0 0.0
        %340 = vmatpush1.msra.mxu0 0.0
        %341 = vmatprep.subr.mxu0 0.0
        %342 = vmatpush1.msra.mxu0 0.0
        %343 = vmatprep.subr.mxu0 0.0
        %344 = vmatpush1.msra.mxu0 0.0
        %345 = vmatprep.mubr.f32.mxu0 0.0
        %346 = vmatmul.mubr.f32.gmra.mrb[0].mxu0 %v279
        %v347 = vpop.f32.mrb[0].mxu0
        %v348 = vadd.f32 0.0, %v347
        %v349 = vpop.f32.mrb[0].mxu0
        %350 = vdwg.mxu0
        %v352 = vsel %vm277, %v348, 0
        %v355 = vsel %vm277, %v272, 0
        %357 = vmatprep.subr.mxu0 0.0
        %358 = vmatpush1.xpose.msra.mxu0 %v355
        %359 = vmatprep.subr.mxu0 0.0
        %360 = vmatpush1.xpose.msra.mxu0 0.0
        %361 = vmatprep.subr.mxu0 0.0
        %362 = vmatpush1.xpose.msra.mxu0 0.0
        %363 = vmatprep.subr.mxu0 0.0
        %364 = vmatpush1.xpose.msra.mxu0 0.0
        %365 = vmatprep.subr.mxu0 0.0
        %366 = vmatpush1.xpose.msra.mxu0 0.0
        %367 = vmatprep.subr.mxu0 0.0
        %368 = vmatpush1.xpose.msra.mxu0 0.0
        %369 = vmatprep.subr.mxu0 0.0
        %370 = vmatpush1.xpose.msra.mxu0 0.0
        %371 = vmatprep.subr.mxu0 0.0
        %372 = vmatpush1.xpose.msra.mxu0 0.0
        %373 = vmatprep.subr.mxu0 0.0
        %374 = vmatpush1.xpose.msra.mxu0 0.0
        %375 = vmatprep.subr.mxu0 0.0
        %376 = vmatpush1.xpose.msra.mxu0 0.0
        %377 = vmatprep.subr.mxu0 0.0
        %378 = vmatpush1.xpose.msra.mxu0 0.0
        %379 = vmatprep.subr.mxu0 0.0
        %380 = vmatpush1.xpose.msra.mxu0 0.0
        %381 = vmatprep.subr.mxu0 0.0
        %382 = vmatpush1.xpose.msra.mxu0 0.0
        %383 = vmatprep.subr.mxu0 0.0
        %384 = vmatpush1.xpose.msra.mxu0 0.0
        %385 = vmatprep.subr.mxu0 0.0
        %386 = vmatpush1.xpose.msra.mxu0 0.0
        %387 = vmatprep.subr.mxu0 0.0
        %388 = vmatpush1.xpose.msra.mxu0 0.0
        %389 = vmatprep.subr.mxu0 0.0
        %390 = vmatpush1.xpose.msra.mxu0 0.0
        %391 = vmatprep.subr.mxu0 0.0
        %392 = vmatpush1.xpose.msra.mxu0 0.0
        %393 = vmatprep.subr.mxu0 0.0
        %394 = vmatpush1.xpose.msra.mxu0 0.0
        %395 = vmatprep.subr.mxu0 0.0
        %396 = vmatpush1.xpose.msra.mxu0 0.0
        %397 = vmatprep.subr.mxu0 0.0
        %398 = vmatpush1.xpose.msra.mxu0 0.0
        %399 = vmatprep.subr.mxu0 0.0
        %400 = vmatpush1.xpose.msra.mxu0 0.0
        %401 = vmatprep.subr.mxu0 0.0
        %402 = vmatpush1.xpose.msra.mxu0 0.0
        %403 = vmatprep.subr.mxu0 0.0
        %404 = vmatpush1.xpose.msra.mxu0 0.0
        %405 = vmatprep.subr.mxu0 0.0
        %406 = vmatpush1.xpose.msra.mxu0 0.0
        %407 = vmatprep.subr.mxu0 0.0
        %408 = vmatpush1.xpose.msra.mxu0 0.0
        %409 = vmatprep.subr.mxu0 0.0
        %410 = vmatpush1.xpose.msra.mxu0 0.0
        %411 = vmatprep.subr.mxu0 0.0
        %412 = vmatpush1.xpose.msra.mxu0 0.0
        %413 = vmatprep.subr.mxu0 0.0
        %414 = vmatpush1.xpose.msra.mxu0 0.0
        %415 = vmatprep.subr.mxu0 0.0
        %416 = vmatpush1.xpose.msra.mxu0 0.0
        %417 = vmatprep.subr.mxu0 0.0
        %418 = vmatpush1.xpose.msra.mxu0 0.0
        %419 = vmatprep.subr.mxu0 0.0
        %420 = vmatpush1.xpose.msra.mxu0 0.0
        %421 = vmatprep.mubr.f32.mxu0 0.0
        %422 = vmatmul.mubr.f32.gmra.mrb[0].mxu0 %v352
        %v423 = vpop.f32.mrb[0].mxu0
        %v424 = vadd.f32 0.0, %v423
        %v425 = vpop.f32.mrb[0].mxu0
        %426 = vdwg.mxu0
        %vm427 = vcmask 64512
        %428 = vst.msk [vmem:[%s270] sm:$0xff] %vm427, %v424
        %s429 = sand.u32 %s134, 1
        %s430 = scalar_lea.sflag [#allocation4], %s429
        %s431 = sand.u32 %s134, 1
        %s432 = smul.addr %s431, 8
        %s433 = scalar_lea.vmem [#allocation8], %s432
        // Predicated region
        $region45: #{tpu_custom_call.1} parent=31 // pred_check
          %p434 = pneg %p144
        $region46: #{tpu_custom_call.1} parent=31 // pred_check_branch
          %436 = sbr.rel (%p434) target = $region48
        $region47: #{tpu_custom_call.1} parent=31 // pred_region
          %s438 = ssub.s32 128, 128
          %439 = vsyncadd %s430, %s438
          %s440 = sadd.s32 %s30, %s29
          %s441 = sadd.s32 %s440, %s28
          %s442 = smul.addr %s441, 128
          %s443 = scalar_lea.hbm %s3, %s442
          %s445 = sshll.u32 %s433, 4
          %s446 = int_to_ptr.vmem [resolvable:$true] %s445
          %448 = dma.vmem_to_hbm [thread:$0]  %s446, 128, %s443, %s430
        $region48: #{tpu_custom_call.1} parent=31 // pred_fallthru
          _
      $region32: #{tpu_custom_call.1} parent=5 // pred_fallthru
        _
      %p449 = scmp.le.s32.totalorder 2, %s18
      // Predicated region
      $region49: #{tpu_custom_call.1} parent=5 // pred_check
        %p450 = pneg %p449
      $region50: #{tpu_custom_call.1} parent=5 // pred_check_branch
        %452 = sbr.rel (%p450) target = $region52
      $region51: #{tpu_custom_call.1} parent=5 // pred_region
        %s453 = ssub.s32 %s18, 2
        // Predicated region
        $region53: #{tpu_custom_call.1} parent=51 // pred_check
          %p454 = pneg %p150
        $region54: #{tpu_custom_call.1} parent=51 // pred_check_branch
          %456 = sbr.rel (%p454) target = $region56
        $region55: #{tpu_custom_call.1} parent=51 // pred_region
          %s457 = sand.u32 %s135, 1
          %s458 = scalar_lea.sflag [#allocation4], %s457
          %s459 = sand.u32 %s135, 1
          %s460 = smul.addr %s459, 8
          %s461 = scalar_lea.vmem [#allocation8], %s460
          %462 = dma.done %s458, 128
        $region56: #{tpu_custom_call.1} parent=51 // pred_fallthru
          _
      $region52: #{tpu_custom_call.1} parent=5 // pred_fallthru
        _
    $region6: #{tpu_custom_call.1} parent=1 // loop_footer
      %s22 = sadd.s32 1, %s18
    $region7: #{tpu_custom_call.1} parent=1 // loop_footer_branch
      %17 = sbr.rel target = $region3
    $region8: #{tpu_custom_call.1} parent=1 // loop_exit
      _
    %463 = vsyncpa [#allocation3], 1
    %s464 = scalar_lea.sflag [#allocation3], 1
    %465 = vsyncpa %s464, 1
    %466 = vsyncpa [#allocation6], 1
    %s467 = scalar_lea.sflag [#allocation6], 1
    %468 = vsyncpa %s467, 1
    %469 = vsyncpa [#allocation4], 1
    %s470 = scalar_lea.sflag [#allocation4], 1
    %471 = vsyncpa %s470, 1

</llo_original>
